<compile_context>
chip_gen: v5e
topology: v5e:2x2
jax: 0.10.0
libtpu: 0.0.40
codegen_flags: <defaults>
</compile_context>

<pallas_src>
import jax
import jax.numpy as jnp
from jax.experimental import pallas as pl
from jax.experimental.pallas import tpu as pltpu


def _round_up(n: int, m: int) -> int:
    return ((n + m - 1) // m) * m


def _mlp_kernel(xt_ref, w1_ref, b1_ref, w2_ref, b2_ref, o_ref):
    # fc1: (H, D) @ (D, TILE_B) -> (H, TILE_B), f32 accumulate on the MXU.
    h = jnp.dot(w1_ref[...], xt_ref[...], preferred_element_type=jnp.float32)
    h = h + b1_ref[...]            # (H, 1) bias broadcast across lanes
    h = jnp.maximum(h, 0.0)        # ReLU (VPU)
    # fc2: N=1 matvec done as VPU multiply + sublane (XLU) reduce -> (1, TILE_B)
    out = jnp.sum(h * w2_ref[...], axis=0, keepdims=True)
    out = out + b2_ref[...]        # (1, 1) bias
    # Sigmoid: exp on the EUP, exact reciprocal (keeps f32 accuracy on all gens).
    out = pl.reciprocal(1.0 + jnp.exp(-out))
    o_ref[...] = out.astype(o_ref.dtype)


def net_forward(x, w1, b1, w2, b2, *, tile_b: int = 512):
    """Forward pass of Net.

    x:  (B, D)  input (batch-major, as in PyTorch)
    w1: (H, D)  fc1.weight  (PyTorch (out, in) layout)
    b1: (H,)    fc1.bias
    w2: (1, H)  fc2.weight
    b2: (1,)    fc2.bias
    returns (B, 1) float32
    """
    B, D = x.shape
    H = w1.shape[0]

    # Lane-dense batch tiling: TILE_B is a multiple of 128, clamped for tiny B.
    tb = min(tile_b, _round_up(max(B, 1), 128))
    b_pad = _round_up(B, tb)
    num_tiles = b_pad // tb

    # Wrapper-side layout plumbing: batch on the lane axis, zero-pad ragged tail.
    xt = x.T.astype(jnp.float32)                     # (D, B)
    if b_pad != B:
        xt = jnp.pad(xt, ((0, 0), (0, b_pad - B)))   # (D, B_pad)

    b1c = b1.reshape(H, 1).astype(jnp.float32)       # (H, 1)
    w2c = w2.reshape(H, 1).astype(jnp.float32)       # (H, 1)
    b2c = b2.reshape(1, 1).astype(jnp.float32)       # (1, 1)
    w1f = w1.astype(jnp.float32)                     # (H, D)

    out = pl.pallas_call(
        _mlp_kernel,
        out_shape=jax.ShapeDtypeStruct((1, b_pad), jnp.float32),
        grid=(num_tiles,),
        in_specs=[
            pl.BlockSpec((D, tb), lambda i: (0, i)),   # x^T tile (pipelined)
            pl.BlockSpec((H, D), lambda i: (0, 0)),    # W1 resident
            pl.BlockSpec((H, 1), lambda i: (0, 0)),    # b1 resident
            pl.BlockSpec((H, 1), lambda i: (0, 0)),    # w2 resident
            pl.BlockSpec((1, 1), lambda i: (0, 0)),    # b2 resident
        ],
        out_specs=pl.BlockSpec((1, tb), lambda i: (0, i)),  # lane-dense slab
        compiler_params=pltpu.CompilerParams(
            dimension_semantics=("parallel",),
        ),
    )(xt, w1f, b1c, w2c, b2c)

    return out[0, :B].reshape(B, 1)


def _reference(x, w1, b1, w2, b2):
    h = jnp.maximum(x @ w1.T + b1, 0.0)
    return jax.nn.sigmoid(h @ w2.T + b2)


if __name__ == "__main__":
    # Small shapes consistent with the module: Net(input_size=16, hidden_size=32)
    batch = 8
    input_size = 16
    hidden_size = 32

    key = jax.random.PRNGKey(0)
    kx, kw1, kb1, kw2, kb2, kx2 = jax.random.split(key, 6)

    x = jax.random.normal(kx, (batch, input_size), dtype=jnp.float32)

    # Parameters in PyTorch nn.Linear layout: weight (out, in), bias (out,)
    w1 = jax.random.normal(kw1, (hidden_size, input_size), dtype=jnp.float32) * 0.1
    b1 = jax.random.normal(kb1, (hidden_size,), dtype=jnp.float32) * 0.1
    w2 = jax.random.normal(kw2, (1, hidden_size), dtype=jnp.float32) * 0.1
    b2 = jax.random.normal(kb2, (1,), dtype=jnp.float32) * 0.1

    # Tiny-batch path (single 128-lane tile, grid size 1)
    out = jax.block_until_ready(net_forward(x, w1, b1, w2, b2))
    ref = _reference(x, w1, b1, w2, b2)
    assert out.shape == (batch, 1)
    assert jnp.allclose(out, ref, atol=1e-5, rtol=1e-5)

    # Ragged multi-tile path (exercises grid > 1 and tail padding)
    x2 = jax.random.normal(kx2, (300, input_size), dtype=jnp.float32)
    out2 = jax.block_until_ready(net_forward(x2, w1, b1, w2, b2, tile_b=128))
    ref2 = _reference(x2, w1, b1, w2, b2)
    assert out2.shape == (300, 1)
    assert jnp.allclose(out2, ref2, atol=1e-5, rtol=1e-5)

    print("KERNEL_OK")
</pallas_src>

<mosaic_0001>
module attributes {stable_mosaic.version = 11 : i64} {
  func.func @_mlp_kernel(%arg0: i32, %arg1: memref<16x128xf32, #tpu.memory_space<vmem>>, %arg2: memref<32x16xf32, #tpu.memory_space<vmem>>, %arg3: memref<32x1xf32, #tpu.memory_space<vmem>>, %arg4: memref<32x1xf32, #tpu.memory_space<vmem>>, %arg5: memref<1x1xf32, #tpu.memory_space<vmem>>, %arg6: memref<1x128xf32, #tpu.memory_space<vmem>>) attributes {dimension_semantics = [#tpu.dimension_semantics<parallel>], iteration_bounds = array<i64: 1>, scalar_prefetch = 0 : i64, scratch_operands = 0 : i64, tpu.core_type = #tpu.core_type<tc>, window_params = [{transform_indices = @transform_0, window_bounds = array<i64: 16, 128>}, {pipeline_mode = #tpu.pipeline_mode<synchronous>, transform_indices = @transform_1, window_bounds = array<i64: 32, 16>}, {pipeline_mode = #tpu.pipeline_mode<synchronous>, transform_indices = @transform_2, window_bounds = array<i64: 32, 1>}, {pipeline_mode = #tpu.pipeline_mode<synchronous>, transform_indices = @transform_3, window_bounds = array<i64: 32, 1>}, {pipeline_mode = #tpu.pipeline_mode<synchronous>, transform_indices = @transform_4, window_bounds = array<i64: 1, 1>}, {transform_indices = @transform_5, window_bounds = array<i64: 1, 128>}]} {
    %c0 = arith.constant 0 : index
    %c0_0 = arith.constant 0 : index
    %0 = vector.load %arg2[%c0, %c0_0] : memref<32x16xf32, #tpu.memory_space<vmem>>, vector<32x16xf32>
    %c0_1 = arith.constant 0 : index
    %c0_2 = arith.constant 0 : index
    %1 = vector.load %arg1[%c0_1, %c0_2] : memref<16x128xf32, #tpu.memory_space<vmem>>, vector<16x128xf32>
    %cst = arith.constant dense<0.000000e+00> : vector<32x128xf32>
    %2 = tpu.matmul %0, %1, %cst {dimension_numbers = #tpu.dot_dimension_numbers<[1], [0], [0], [1], [0, 0, 1, 1], [], []>} : vector<32x16xf32>, vector<16x128xf32>, vector<32x128xf32> -> vector<32x128xf32>
    %c0_3 = arith.constant 0 : index
    %c0_4 = arith.constant 0 : index
    %3 = vector.load %arg3[%c0_3, %c0_4] : memref<32x1xf32, #tpu.memory_space<vmem>>, vector<32x1xf32>
    %4 = vector.broadcast %3 : vector<32x1xf32> to vector<32x128xf32>
    %5 = arith.addf %2, %4 : vector<32x128xf32>
    %cst_5 = arith.constant 0.000000e+00 : f32
    %6 = vector.broadcast %cst_5 : f32 to vector<32x128xf32>
    %7 = arith.maximumf %5, %6 : vector<32x128xf32>
    %c0_6 = arith.constant 0 : index
    %c0_7 = arith.constant 0 : index
    %8 = vector.load %arg4[%c0_6, %c0_7] : memref<32x1xf32, #tpu.memory_space<vmem>>, vector<32x1xf32>
    %9 = vector.broadcast %8 : vector<32x1xf32> to vector<32x128xf32>
    %10 = arith.mulf %7, %9 : vector<32x128xf32>
    %cst_8 = arith.constant dense<0.000000e+00> : vector<128xf32>
    %11 = vector.multi_reduction <add>, %10, %cst_8 [0] : vector<32x128xf32> to vector<128xf32>
    %12 = vector.shape_cast %11 : vector<128xf32> to vector<1x128xf32>
    %c0_9 = arith.constant 0 : index
    %c0_10 = arith.constant 0 : index
    %13 = vector.load %arg5[%c0_9, %c0_10] : memref<1x1xf32, #tpu.memory_space<vmem>>, vector<1x1xf32>
    %14 = vector.broadcast %13 : vector<1x1xf32> to vector<1x128xf32>
    %15 = arith.addf %12, %14 : vector<1x128xf32>
    %cst_11 = arith.constant 0.000000e+00 : f32
    %16 = vector.broadcast %cst_11 : f32 to vector<1x128xf32>
    %17 = arith.subf %16, %15 : vector<1x128xf32>
    %18 = math.exp %17 : vector<1x128xf32>
    %cst_12 = arith.constant 1.000000e+00 : f32
    %19 = vector.broadcast %cst_12 : f32 to vector<1x128xf32>
    %20 = arith.addf %19, %18 : vector<1x128xf32>
    %21 = tpu.reciprocal %20 : vector<1x128xf32> -> vector<1x128xf32>
    %c0_13 = arith.constant 0 : index
    %c0_14 = arith.constant 0 : index
    %22 = vector.load %arg6[%c0_13, %c0_14] : memref<1x128xf32, #tpu.memory_space<vmem>>, vector<1x128xf32>
    tpu.vector_store %arg6[%c0_13, %c0_14], %21 {strides = array<i32>} : memref<1x128xf32, #tpu.memory_space<vmem>>, vector<1x128xf32>,
    return
  }
  func.func @transform_0(%arg0: i32) -> (i32, i32) {
    %c0_i32 = arith.constant 0 : i32
    %c0_i32_0 = arith.constant 0 : i32
    return %c0_i32, %arg0 : i32, i32
  }
  func.func @transform_1(%arg0: i32) -> (i32, i32) {
    %c0_i32 = arith.constant 0 : i32
    %c0_i32_0 = arith.constant 0 : i32
    %c0_i32_1 = arith.constant 0 : i32
    return %c0_i32, %c0_i32_0 : i32, i32
  }
  func.func @transform_2(%arg0: i32) -> (i32, i32) {
    %c0_i32 = arith.constant 0 : i32
    %c0_i32_0 = arith.constant 0 : i32
    %c0_i32_1 = arith.constant 0 : i32
    return %c0_i32, %c0_i32_0 : i32, i32
  }
  func.func @transform_3(%arg0: i32) -> (i32, i32) {
    %c0_i32 = arith.constant 0 : i32
    %c0_i32_0 = arith.constant 0 : i32
    %c0_i32_1 = arith.constant 0 : i32
    return %c0_i32, %c0_i32_0 : i32, i32
  }
  func.func @transform_4(%arg0: i32) -> (i32, i32) {
    %c0_i32 = arith.constant 0 : i32
    %c0_i32_0 = arith.constant 0 : i32
    %c0_i32_1 = arith.constant 0 : i32
    return %c0_i32, %c0_i32_0 : i32, i32
  }
  func.func @transform_5(%arg0: i32) -> (i32, i32) {
    %c0_i32 = arith.constant 0 : i32
    %c0_i32_0 = arith.constant 0 : i32
    return %c0_i32, %arg0 : i32, i32
  }
}

</mosaic_0001>

<llo_original>
// kernel: tpu_custom_call.1
$region0: #{tpu_custom_call.1}
  #allocation0 [shape = 'u32[]', space=smem, size = 0x4, offset = 0x4, fixed_abs, tag = 'smem constant byte address 0x4 - core index']
  #allocation1 [shape = 'u32[72,128]{1,0:T(1,128)}', space=vmem, size = 0x9000, scoped, tag = 'internal scratch']
  #allocation2 [shape = 'f32[1,1]{1,0:T(1,128)S(1)}', space=vmem, size = 0x200, scoped, tag = 'scoped memory for tpu_custom_call.1']
  %s0 = inlined_call_operand.vmem [shape: f32[16,128], index: 0, kind: input, shape index: {}]
  %s1 = inlined_call_operand.vmem [shape: f32[32,16], index: 1, kind: input, shape index: {}]
  %s2 = inlined_call_operand.vmem [shape: f32[32,1], index: 2, kind: input, shape index: {}]
  %s3 = inlined_call_operand.vmem [shape: f32[32,1], index: 3, kind: input, shape index: {}]
  %s4 = inlined_call_operand.<no memory space> [shape: f32[1,1], index: 4, kind: input, shape index: {}]
  %s5 = inlined_call_operand.hbm [shape: f32[1,128], index: 5, kind: output, shape index: {}]
  %s6 = sld [smem:[#allocation0]]
  $region30: #{tpu_custom_call.1} parent=0
    _
  %s8 = ssub.s32 1, %s6
  %s9 = scalar_select 0, %s8, %s6
  %v10 = vstv %s4
  %11 = vst [vmem:[#allocation2] sm:$0x1] %v10
  $region1: #{tpu_custom_call.1} parent=0
    #allocation3 [shape = 'u8[512]{0}', space=vmem, size = 0x400, scoped, tag = 'output window, operand 0, single buffered']
    #allocation4 [shape = 's32[1]{0}', space=sflag, size = 0x4, scoped, tag = 'scoped memory for tpu_custom_call.1']
    %12 = vsyncpa [#allocation4], 0
    // Predicated region
    $region2: #{tpu_custom_call.1} parent=1 // pred_check
      _
    $region3: #{tpu_custom_call.1} parent=1 // pred_check_branch
      %14 = sbr.rel (0) target = $region5
    $region4: #{tpu_custom_call.1} parent=1 // pred_region
      _
    $region5: #{tpu_custom_call.1} parent=1 // pred_fallthru
      _
    // Predicated region
    $region6: #{tpu_custom_call.1} parent=1 // pred_check
      _
    $region7: #{tpu_custom_call.1} parent=1 // pred_check_branch
      %16 = sbr.rel (0) target = $region9
    $region8: #{tpu_custom_call.1} parent=1 // pred_region
      _
    $region9: #{tpu_custom_call.1} parent=1 // pred_fallthru
      _
    // Predicated region
    $region10: #{tpu_custom_call.1} parent=1 // pred_check
      _
    $region11: #{tpu_custom_call.1} parent=1 // pred_check_branch
      %18 = sbr.rel (0) target = $region13
    $region12: #{tpu_custom_call.1} parent=1 // pred_region
      _
    $region13: #{tpu_custom_call.1} parent=1 // pred_fallthru
      _
    // Predicated region
    $region14: #{tpu_custom_call.1} parent=1 // pred_check
      _
    $region15: #{tpu_custom_call.1} parent=1 // pred_check_branch
      %20 = sbr.rel (0) target = $region17
    $region16: #{tpu_custom_call.1} parent=1 // pred_region
      _
    $region17: #{tpu_custom_call.1} parent=1 // pred_fallthru
      _
    // Predicated region
    $region18: #{tpu_custom_call.1} parent=1 // pred_check
      _
    $region19: #{tpu_custom_call.1} parent=1 // pred_check_branch
      %22 = sbr.rel (0) target = $region21
    $region20: #{tpu_custom_call.1} parent=1 // pred_region
      _
    $region21: #{tpu_custom_call.1} parent=1 // pred_fallthru
      _
    %v23 = vld [vmem:[%s1] sm:$0xff]
    %v24 = vld [vmem:[%s1 + $0x8] sm:$0xff]
    %v25 = vld [vmem:[%s1 + $0x10] sm:$0xff]
    %v26 = vld [vmem:[%s1 + $0x18] sm:$0xff]
    %v27 = vld [vmem:[%s0] sm:$0xff]
    %v28 = vld [vmem:[%s0 + $0x8] sm:$0xff]
    %v29 = vld [vmem:[%s2] sm:$0xff]
    %v30 = vld [vmem:[%s2 + $0x8] sm:$0xff]
    %v31 = vld [vmem:[%s2 + $0x10] sm:$0xff]
    %v32 = vld [vmem:[%s2 + $0x18] sm:$0xff]
    %34 = vset.pattern.permute.xlu0 0
    %35 = vperm.xlu0 %34, %v29
    %v36 = vpop.permute.xlu0 %35
    %39 = vset.pattern.permute.xlu0 0
    %40 = vperm.xlu0 %39, %v30
    %v41 = vpop.permute.xlu0 %40
    %44 = vset.pattern.permute.xlu0 0
    %45 = vperm.xlu0 %44, %v31
    %v46 = vpop.permute.xlu0 %45
    %49 = vset.pattern.permute.xlu0 0
    %50 = vperm.xlu0 %49, %v32
    %v51 = vpop.permute.xlu0 %50
    %vm53 = vcmask 130048
    %v55 = vsel %vm53, %v23, 0
    %v58 = vsel %vm53, %v24, 0
    %v61 = vsel %vm53, %v25, 0
    %v64 = vsel %vm53, %v26, 0
    %66 = vmatpush.msra.mxu0 0.0
    %67 = vmatpush.msra.mxu0 0.0
    %68 = vmatpush.msra.mxu0 0.0
    %69 = vmatpush.msra.mxu0 0.0
    %70 = vmatpush.msra.mxu0 0.0
    %71 = vmatpush.msra.mxu0 0.0
    %72 = vmatpush.msra.mxu0 0.0
    %73 = vmatpush.msra.mxu0 0.0
    %74 = vmatpush.msra.mxu0 0.0
    %75 = vmatpush.msra.mxu0 0.0
    %76 = vmatpush.msra.mxu0 0.0
    %77 = vmatpush.msra.mxu0 0.0
    %78 = vmatpush.msra.mxu0 0.0
    %79 = vmatpush.msra.mxu0 0.0
    %80 = vmatpush.msra.mxu0 %v28
    %81 = vmatpush.msra.mxu0 %v27
    %82 = vmatmul.f32.gmra.mxu0 %v55
    %v83 = vpop.f32.mrf.mxu0
    %v84 = vadd.f32 %v36, %v83
    %85 = vmatmul.f32.gmra.mxu0 %v58
    %v86 = vpop.f32.mrf.mxu0
    %v87 = vadd.f32 %v41, %v86
    %88 = vmatmul.f32.gmra.mxu0 %v61
    %v89 = vpop.f32.mrf.mxu0
    %v90 = vadd.f32 %v46, %v89
    %91 = vmatmul.f32.gmra.mxu0 %v64
    %v92 = vpop.f32.mrf.mxu0
    %v93 = vadd.f32 %v51, %v92
    %94 = vdwg.mxu0
    %v95 = vmax.f32 %v84, 0.0
    %v96 = vmax.f32 %v87, 0.0
    %v97 = vmax.f32 %v90, 0.0
    %v98 = vmax.f32 %v93, 0.0
    %v99 = vld [vmem:[%s3] sm:$0xff]
    %v100 = vld [vmem:[%s3 + $0x8] sm:$0xff]
    %v101 = vld [vmem:[%s3 + $0x10] sm:$0xff]
    %v102 = vld [vmem:[%s3 + $0x18] sm:$0xff]
    %104 = vset.pattern.permute.xlu0 0
    %105 = vperm.xlu0 %104, %v99
    %v106 = vpop.permute.xlu0 %105
    %109 = vset.pattern.permute.xlu0 0
    %110 = vperm.xlu0 %109, %v100
    %v111 = vpop.permute.xlu0 %110
    %114 = vset.pattern.permute.xlu0 0
    %115 = vperm.xlu0 %114, %v101
    %v116 = vpop.permute.xlu0 %115
    %119 = vset.pattern.permute.xlu0 0
    %120 = vperm.xlu0 %119, %v102
    %v121 = vpop.permute.xlu0 %120
    %v123 = vmul.f32 %v95, %v106
    %v124 = vmul.f32 %v96, %v111
    %v125 = vmul.f32 %v97, %v116
    %v126 = vmul.f32 %v98, %v121
    %v127 = vadd.f32 %v123, %v124
    %v128 = vadd.f32 %v127, %v125
    %v129 = vadd.f32 %v128, %v126
    %v130 = vrot.slane %v129, 4
    %v131 = vadd.f32 %v129, %v130
    %v132 = vrot.slane %v131, 2
    %v133 = vadd.f32 %v131, %v132
    %v134 = vrot.slane %v133, 1
    %v135 = vadd.f32 %v133, %v134
    %v136 = vld [vmem:[#allocation2] sm:$0x1]
    %138 = vset.pattern.permute.xlu0 0
    %139 = vperm.xlu0 %138, %v136
    %v140 = vpop.permute.xlu0 %139
    %v142 = vperm.slane %v140, 0
    %v143 = vadd.f32 %v135, %v142
    %v144 = vsub.f32 0.0, %v143
    %v145 = vmul.f32 %v144, 1.442695
    %v146 = vpow.pop %v145
    %v147 = vadd.f32 %v146, 1.0
    %v148 = vrcp.pop %v147
    %v149 = vmul.f32 %v147, %v148
    %v150 = vsub.f32 1.0, %v149
    %v151 = vmul.f32 %v148, %v150
    %v152 = vadd.f32 %v148, %v151
    %vm153 = vweird.f32 %v147
    %vm154 = vweird.f32 %v148
    %vm155 = vmor %vm153, %vm154
    %v156 = vsel %vm155, %v148, %v152
    %v157 = vand.u32 2147483647, %v147
    %vm158 = vcmp.eq.f32.partialorder %v157, 8.507059e+37
    %v159 = vand.u32 %v147, 2147483648
    %v160 = vor.u32 1.1754944e-38, %v159
    %v161 = vsel %vm158, %v160, %v156
    %162 = vst [vmem:[#allocation3] sm:$0x1] %v161
    // Predicated region
    $region22: #{tpu_custom_call.1} parent=1 // pred_check
      _
    $region23: #{tpu_custom_call.1} parent=1 // pred_check_branch
      %164 = sbr.rel (0) target = $region25
    $region24: #{tpu_custom_call.1} parent=1 // pred_region
      %166 = vsyncadd [#allocation4], 0
      %s168 = sshll.u32 [#allocation3], 4
      %s169 = int_to_ptr.vmem [resolvable:$true] %s168
      %s170 = sshll.u32 %s5, 4
      %s171 = int_to_ptr.hbm [resolvable:$true] %s170
      %173 = dma.vmem_to_hbm [thread:$0]  %s169, 16, %s171, [#allocation4]
    $region25: #{tpu_custom_call.1} parent=1 // pred_fallthru
      _
    // Predicated region
    $region26: #{tpu_custom_call.1} parent=1 // pred_check
      _
    $region27: #{tpu_custom_call.1} parent=1 // pred_check_branch
      %175 = sbr.rel (0) target = $region29
    $region28: #{tpu_custom_call.1} parent=1 // pred_region
      %177 = dma.done [#allocation4], 16
    $region29: #{tpu_custom_call.1} parent=1 // pred_fallthru
      _
    %178 = vsyncpa [#allocation4], 1

</llo_original>
